<compile_context>
chip_gen: v7x
topology: tpu7x:2x2x1
jax: 0.10.0
libtpu: 0.0.40
codegen_flags: <defaults>
</compile_context>

<pallas_src>
import functools
import math

import jax
import jax.numpy as jnp
from jax.experimental import pallas as pl
from jax.experimental.pallas import tpu as pltpu

_LN_EPS = 1e-5


def _row_tile(m, target=512):
    """Largest row tile <= target that divides m (prefers multiples of 8)."""
    if m <= target:
        return m
    for t in range(target, 0, -1):
        if m % t == 0 and t % 8 == 0:
            return t
    return m


def _layer_norm(y, g, b):
    mu = jnp.mean(y, axis=-1, keepdims=True)
    var = jnp.mean(jnp.square(y - mu), axis=-1, keepdims=True)
    return (y - mu) * jax.lax.rsqrt(var + _LN_EPS) * g + b


# ----------------------------- Pallas kernels ------------------------------

def _linear_kernel(x_ref, w_ref, b_ref, o_ref):
    x = x_ref[0].astype(jnp.bfloat16)
    w = w_ref[0].astype(jnp.bfloat16)
    o_ref[0] = jnp.dot(x, w, preferred_element_type=jnp.float32) + b_ref[0]


def tower_linear(x, w, b):
    """y[t] = x[t] @ w[t] + b[t].  x: (T, M, K), w: (T, K, N), b: (T, 1, N)."""
    T, M, K = x.shape
    N = w.shape[2]
    tm = _row_tile(M)
    return pl.pallas_call(
        _linear_kernel,
        out_shape=jax.ShapeDtypeStruct((T, M, N), jnp.float32),
        grid=(T, M // tm),
        in_specs=[
            pl.BlockSpec((1, tm, K), lambda t, i: (t, i, 0)),
            pl.BlockSpec((1, K, N), lambda t, i: (t, 0, 0)),
            pl.BlockSpec((1, 1, N), lambda t, i: (t, 0, 0)),
        ],
        out_specs=pl.BlockSpec((1, tm, N), lambda t, i: (t, i, 0)),
        compiler_params=pltpu.CompilerParams(
            dimension_semantics=("parallel", "parallel")),
    )(x, w, b)


def _block_tail_kernel(a_ref, x_ref, wo_ref, bo_ref, g1_ref, bb1_ref,
                       wf1_ref, bf1_ref, wf2_ref, bf2_ref, g2_ref, bb2_ref,
                       o_ref):
    # y = LN1(x + a @ wo + bo) ; out = LN2(y + relu(y @ wf1 + bf1) @ wf2 + bf2)
    a = a_ref[0].astype(jnp.bfloat16)
    y = (x_ref[0]
         + jnp.dot(a, wo_ref[0].astype(jnp.bfloat16),
                   preferred_element_type=jnp.float32)
         + bo_ref[0])
    y = _layer_norm(y, g1_ref[0], bb1_ref[0])
    h = jnp.dot(y.astype(jnp.bfloat16), wf1_ref[0].astype(jnp.bfloat16),
                preferred_element_type=jnp.float32) + bf1_ref[0]
    h = jnp.maximum(h, 0.0)
    z = (y
         + jnp.dot(h.astype(jnp.bfloat16), wf2_ref[0].astype(jnp.bfloat16),
                   preferred_element_type=jnp.float32)
         + bf2_ref[0])
    o_ref[0] = _layer_norm(z, g2_ref[0], bb2_ref[0])


def block_tail(a, x, wo, bo, g1, b1, wf1, bf1, wf2, bf2, g2, b2):
    """Fused: out-projection + residual + LN + FFN + residual + LN."""
    T, M, D = x.shape
    F = wf1.shape[2]
    tm = _row_tile(M)

    def row(shape_last):
        return pl.BlockSpec((1, tm, shape_last), lambda t, i: (t, i, 0))

    def mat(k, n):
        return pl.BlockSpec((1, k, n), lambda t, i: (t, 0, 0))

    def vec(n):
        return pl.BlockSpec((1, 1, n), lambda t, i: (t, 0, 0))

    return pl.pallas_call(
        _block_tail_kernel,
        out_shape=jax.ShapeDtypeStruct((T, M, D), jnp.float32),
        grid=(T, M // tm),
        in_specs=[
            row(D),            # a
            row(D),            # x
            mat(D, D),         # wo
            vec(D), vec(D), vec(D),   # bo, ln1_g, ln1_b
            mat(D, F),         # wf1
            vec(F),            # bf1
            mat(F, D),         # wf2
            vec(D), vec(D), vec(D),   # bf2, ln2_g, ln2_b
        ],
        out_specs=row(D),
        compiler_params=pltpu.CompilerParams(
            dimension_semantics=("parallel", "parallel")),
    )(a, x, wo, bo, g1, b1, wf1, bf1, wf2, bf2, g2, b2)


def _attn_kernel(q_ref, k_ref, v_ref, b_ref, o_ref, *, num_heads, head_dim):
    # One (tower, batch) element per grid step; all heads handled here.
    # Bias is precomputed (MXU, once per forward) and arrives lane-dense
    # as (H, N, N); output is written lane-dense in merged-head (N, D) layout.
    for h in range(num_heads):
        qh = q_ref[0, 0, h].astype(jnp.bfloat16)   # (N, Dh); 1/sqrt(Dh) folded into wq
        kh = k_ref[0, 0, h].astype(jnp.bfloat16)
        vh = v_ref[0, 0, h].astype(jnp.bfloat16)
        s = jax.lax.dot_general(
            qh, kh, (((1,), (1,)), ((), ())),
            preferred_element_type=jnp.float32) + b_ref[0, 0, h]
        m = jnp.max(s, axis=-1, keepdims=True)
        p = jnp.exp(s - m)
        l = jnp.sum(p, axis=-1, keepdims=True)
        o = jnp.dot(p.astype(jnp.bfloat16), vh,
                    preferred_element_type=jnp.float32)
        o_ref[0, 0, :, h * head_dim:(h + 1) * head_dim] = (
            o * pl.reciprocal(l, approx=True))


def attention(q, k, v, bias):
    """q,k,v: (T,B,H,N,Dh); bias: (T,B,H,N,N) -> out (T,B,N,H*Dh)."""
    T, B, H, N, Dh = q.shape
    D = H * Dh
    return pl.pallas_call(
        functools.partial(_attn_kernel, num_heads=H, head_dim=Dh),
        out_shape=jax.ShapeDtypeStruct((T, B, N, D), jnp.float32),
        grid=(T, B),
        in_specs=[
            pl.BlockSpec((1, 1, H, N, Dh), lambda t, b: (t, b, 0, 0, 0)),
            pl.BlockSpec((1, 1, H, N, Dh), lambda t, b: (t, b, 0, 0, 0)),
            pl.BlockSpec((1, 1, H, N, Dh), lambda t, b: (t, b, 0, 0, 0)),
            pl.BlockSpec((1, 1, H, N, N), lambda t, b: (t, b, 0, 0, 0)),
        ],
        out_specs=pl.BlockSpec((1, 1, N, D), lambda t, b: (t, b, 0, 0)),
        compiler_params=pltpu.CompilerParams(
            dimension_semantics=("parallel", "parallel")),
    )(q, k, v, bias)


def _head_kernel(x_ref, w1_ref, b1_ref, w2_ref, b2_ref, o_ref):
    # Two fused Conv1d(k=3, pad=1) layers (channels-last), ReLU in between.
    x = x_ref[0, 0]                    # (L, Din)
    L = x.shape[0]

    def conv3(h, w0, w1, w2, b, relu):
        row = jax.lax.broadcasted_iota(jnp.int32, h.shape, 0)
        h_prev = jnp.where(row == 0, 0.0, pltpu.roll(h, 1, 0))          # x[i-1]
        h_next = jnp.where(row == L - 1, 0.0, pltpu.roll(h, L - 1, 0))  # x[i+1]
        y = (jnp.dot(h_prev.astype(jnp.bfloat16), w0.astype(jnp.bfloat16),
                     preferred_element_type=jnp.float32)
             + jnp.dot(h.astype(jnp.bfloat16), w1.astype(jnp.bfloat16),
                       preferred_element_type=jnp.float32)
             + jnp.dot(h_next.astype(jnp.bfloat16), w2.astype(jnp.bfloat16),
                       preferred_element_type=jnp.float32)
             + b)
        return jnp.maximum(y, 0.0) if relu else y

    h1 = conv3(x, w1_ref[0, 0], w1_ref[0, 1], w1_ref[0, 2], b1_ref[0], True)
    o_ref[0, 0] = conv3(h1, w2_ref[0, 0], w2_ref[0, 1], w2_ref[0, 2],
                        b2_ref[0], False)


def conv_head(x, w1, b1, w2, b2):
    """x: (T,B,L,D); w1: (T,3,D,D); w2: (T,3,D,Co)."""
    T, B, L, D = x.shape
    Co = w2.shape[-1]
    return pl.pallas_call(
        _head_kernel,
        out_shape=jax.ShapeDtypeStruct((T, B, L, Co), jnp.float32),
        grid=(T, B),
        in_specs=[
            pl.BlockSpec((1, 1, L, D), lambda t, b: (t, b, 0, 0)),
            pl.BlockSpec((1, 3, D, D), lambda t, b: (t, 0, 0, 0)),
            pl.BlockSpec((1, 1, D), lambda t, b: (t, 0, 0)),
            pl.BlockSpec((1, 3, D, Co), lambda t, b: (t, 0, 0, 0)),
            pl.BlockSpec((1, 1, Co), lambda t, b: (t, 0, 0)),
        ],
        out_specs=pl.BlockSpec((1, 1, L, Co), lambda t, b: (t, b, 0, 0)),
        compiler_params=pltpu.CompilerParams(
            dimension_semantics=("parallel", "parallel")),
    )(x, w1, b1, w2, b2)


# ----------------------------- parameters ----------------------------------

def init_tregnn_params(key, *, num_node_classes, num_edge_classes, dim_emb,
                       num_heads, num_conv, max_len, ffn_dim,
                       dim_outs=(15, 12)):
    """Both towers (backbone, torsion) stacked along a leading tower axis."""
    T = len(dim_outs)
    D, H, F = dim_emb, num_heads, ffn_dim
    out_pad = max(dim_outs)
    keys = iter(jax.random.split(key, 256))

    def nrm(shape, scale):
        return (scale * jax.random.normal(next(keys), shape)).astype(jnp.float32)

    scale_q = 1.0 / math.sqrt(D // H)
    params = {
        "node_emb": nrm((T, num_node_classes, D), 0.02),
        "pos_emb": nrm((T, max_len, D), 0.02),
        "edge_emb": nrm((T, num_edge_classes, D), 0.02),
        "blocks": [],
        "dim_outs": tuple(dim_outs),
    }
    for _ in range(num_conv):
        wq = nrm((T, D, D), D ** -0.5)
        wk = nrm((T, D, D), D ** -0.5)
        wv = nrm((T, D, D), D ** -0.5)
        blk = {
            # 1/sqrt(Dh) attention scale folded into the Q projection.
            "wqkv": jnp.concatenate([wq * scale_q, wk, wv], axis=-1),
            "bqkv": jnp.zeros((T, 1, 3 * D), jnp.float32),
            "we": nrm((T, D, H), D ** -0.5),      # edge -> per-head bias weight
            "be": jnp.zeros((T, 1, H), jnp.float32),
            "wo": nrm((T, D, D), D ** -0.5),
            "bo": jnp.zeros((T, 1, D), jnp.float32),
            "ln1_g": jnp.ones((T, 1, D), jnp.float32),
            "ln1_b": jnp.zeros((T, 1, D), jnp.float32),
            "wf1": nrm((T, D, F), D ** -0.5),
            "bf1": jnp.zeros((T, 1, F), jnp.float32),
            "wf2": nrm((T, F, D), F ** -0.5),
            "bf2": jnp.zeros((T, 1, D), jnp.float32),
            "ln2_g": jnp.ones((T, 1, D), jnp.float32),
            "ln2_b": jnp.zeros((T, 1, D), jnp.float32),
        }
        params["blocks"].append(blk)

    # Structure-prediction head; the smaller dim_out tower is zero-padded to
    # out_pad so both towers share one kernel (padding sliced off afterwards).
    w2 = nrm((T, 3, D, out_pad), (3 * D) ** -0.5)
    b2 = jnp.zeros((T, 1, out_pad), jnp.float32)
    col = jnp.arange(out_pad)
    mask = (col[None, :] < jnp.array(dim_outs)[:, None]).astype(jnp.float32)
    params["head"] = {
        "w1": nrm((T, 3, D, D), (3 * D) ** -0.5),
        "b1": jnp.zeros((T, 1, D), jnp.float32),
        "w2": w2 * mask[:, None, None, :],
        "b2": b2 * mask[:, None, :],
    }
    return params


# ------------------------------ forward pass -------------------------------

def get_bb_frames(bb_coords):
    """Gram-Schmidt rigid frames from predicted Ca/C/N (rows 0/1/2)."""
    ca = bb_coords[..., 0, :]
    c = bb_coords[..., 1, :]
    n = bb_coords[..., 2, :]
    v1 = c - ca
    v2 = n - ca
    e1 = v1 / (jnp.linalg.norm(v1, axis=-1, keepdims=True) + 1e-8)
    u2 = v2 - e1 * jnp.sum(e1 * v2, axis=-1, keepdims=True)
    e2 = u2 / (jnp.linalg.norm(u2, axis=-1, keepdims=True) + 1e-8)
    e3 = jnp.cross(e1, e2)
    rot = jnp.stack([e1, e2, e3], axis=-1)    # (B, N, 3, 3)
    return rot, ca


_IDEAL_BB = jnp.array(
    [[-0.525, 1.363, 0.000],      # N
     [0.000, 0.000, 0.000],       # CA
     [1.526, 0.000, 0.000],       # C
     [2.153, 1.062, 0.000],       # O (approx)
     [-0.529, -0.774, -1.205]],   # CB
    dtype=jnp.float32)


def convert_to_coord(rot, trans):
    # TODO(synk): full residue-specific sidechain reconstruction (rigid-group
    # constants + torsion frames) is not reimplemented; idealized backbone
    # atoms are placed via the predicted frames, remaining atom slots zeroed.
    local = jnp.zeros((14, 3), jnp.float32).at[:5].set(_IDEAL_BB)
    atoms = jnp.einsum("bnij,aj->bnai", rot, local) + trans[:, :, None, :]
    mask = (jnp.arange(14) < 5).astype(jnp.float32)
    return atoms * mask[None, None, :, None]


def tregnn_forward(params, node_classes, node_positions, edge_classes,
                   num_heads):
    B, N = node_classes.shape
    Tw, _, D = params["node_emb"].shape
    H = num_heads
    Dh = D // H
    M = B * N
    NB = len(params["blocks"])

    # Embedding gathers + learned positional encoding (glue), per tower.
    x = params["node_emb"][:, node_classes]              # (T, B, N, D)
    x = x + params["pos_emb"][:, node_positions]
    # Edge embeddings gathered in bf16 (halves the one HBM read below).
    edge = params["edge_emb"].astype(jnp.bfloat16)[:, edge_classes]  # (T,B,N,N,D)

    # Per-block, per-head edge attention bias precomputed with ONE tiled MXU
    # matmul (bias weights of all blocks concatenated) -> the big (T,B,N,N,D)
    # edge tensor is read from HBM exactly once per forward pass.
    we_all = jnp.concatenate([blk["we"] for blk in params["blocks"]], axis=-1)
    be_all = jnp.concatenate([blk["be"] for blk in params["blocks"]], axis=-1)
    bias = tower_linear(edge.reshape(Tw, B * N * N, D), we_all, be_all)
    bias = bias.reshape(Tw, B, N, N, NB, H)
    bias = jnp.transpose(bias, (4, 0, 1, 5, 2, 3))       # (NB, T, B, H, N, N)

    x2 = x.reshape(Tw, M, D)
    for ib, blk in enumerate(params["blocks"]):
        # fused QKV projection (one launch, both towers)
        qkv = tower_linear(x2, blk["wqkv"], blk["bqkv"])         # (T, M, 3D)
        qkv = qkv.reshape(Tw, B, N, 3, H, Dh)
        q = jnp.transpose(qkv[:, :, :, 0], (0, 1, 3, 2, 4))      # (T, B, H, N, Dh)
        k = jnp.transpose(qkv[:, :, :, 1], (0, 1, 3, 2, 4))
        v = jnp.transpose(qkv[:, :, :, 2], (0, 1, 3, 2, 4))

        # attention with precomputed lane-dense bias; merged-head output
        a = attention(q, k, v, bias[ib])                         # (T, B, N, D)
        a = a.reshape(Tw, M, D)

        # output projection + residual + LN + FFN + residual + LN (one kernel)
        x2 = block_tail(a, x2, blk["wo"], blk["bo"],
                        blk["ln1_g"], blk["ln1_b"],
                        blk["wf1"], blk["bf1"], blk["wf2"], blk["bf2"],
                        blk["ln2_g"], blk["ln2_b"])

    # StructurePredictionHead: two fused Conv1d(k=3, pad=1) layers.
    h = x2.reshape(Tw, B, N, D)
    out = conv_head(h, params["head"]["w1"], params["head"]["b1"],
                    params["head"]["w2"], params["head"]["b2"])  # (T, B, N, out_pad)

    d_bb, d_tor = params["dim_outs"]
    bb = out[0, :, :, :d_bb]                                     # (B, N, 15)
    tor = out[1, :, :, :d_tor]                                   # (B, N, 12)

    bb_coords = bb.reshape(B, N, 5, 3)       # 0=Ca, 1=C, 2=N, 3=O, 4=Cb
    rot, trans = get_bb_frames(bb_coords)

    torsions = tor.reshape(B, N, 6, 2)
    norm = jnp.linalg.norm(torsions, axis=-1, keepdims=True)
    torsions = torsions / jnp.maximum(norm, 1e-12)   # eps guard against NaN

    atom_coords = convert_to_coord(rot, trans)                   # (B, N, 14, 3)
    plddt = None
    bb_frames = (rot[None, ..., None, :, :], trans[None, ..., None, :])
    return atom_coords[None], torsions, bb_frames, plddt


# --------------------------------- main -------------------------------------

if __name__ == "__main__":
    key = jax.random.PRNGKey(0)
    k_nodes, k_edges, k_params = jax.random.split(key, 3)

    # Small synthetic graph: batch=2, seq_len=16, dim_emb=32, heads=4, 2 blocks.
    B, N = 2, 16
    DIM_EMB, NUM_HEADS, NUM_CONV = 32, 4, 2
    NUM_NODE_CLASSES, NUM_EDGE_CLASSES = 43, 6
    MAX_LEN = 32
    FFN_DIM = 64

    node_classes = jax.random.randint(k_nodes, (B, N), 0, NUM_NODE_CLASSES)
    node_positions = jnp.broadcast_to(jnp.arange(N), (B, N))
    edge_classes = jax.random.randint(k_edges, (B, N, N), 0, NUM_EDGE_CLASSES)

    params = init_tregnn_params(
        k_params,
        num_node_classes=NUM_NODE_CLASSES,
        num_edge_classes=NUM_EDGE_CLASSES,
        dim_emb=DIM_EMB,
        num_heads=NUM_HEADS,
        num_conv=NUM_CONV,
        max_len=MAX_LEN,
        ffn_dim=FFN_DIM,
        dim_outs=(15, 12),       # OutDim.BACKBONE, OutDim.TORSION
    )

    atom_coords, torsions, (rot, trans), plddt = tregnn_forward(
        params, node_classes, node_positions, edge_classes, NUM_HEADS)

    jax.block_until_ready((atom_coords, torsions, rot, trans))
    assert atom_coords.shape == (1, B, N, 14, 3)
    assert torsions.shape == (B, N, 6, 2)
    print("KERNEL_OK")
</pallas_src>

<mosaic_0001>
module attributes {stable_mosaic.version = 11 : i64} {
  func.func @_linear_kernel(%arg0: i32, %arg1: i32, %arg2: memref<1x512x32xbf16, #tpu.memory_space<vmem>>, %arg3: memref<1x32x8xf32, #tpu.memory_space<vmem>>, %arg4: memref<1x1x8xf32, #tpu.memory_space<vmem>>, %arg5: memref<1x512x8xf32, #tpu.memory_space<vmem>>) attributes {dimension_semantics = [#tpu.dimension_semantics<parallel>, #tpu.dimension_semantics<parallel>], iteration_bounds = array<i64: 2, 1>, scalar_prefetch = 0 : i64, scratch_operands = 0 : i64, tpu.core_type = #tpu.core_type<tc>, window_params = [{transform_indices = @transform_0, window_bounds = array<i64: 1, 512, 32>}, {transform_indices = @transform_1, window_bounds = array<i64: 1, 32, 8>}, {transform_indices = @transform_2, window_bounds = array<i64: 1, 1, 8>}, {transform_indices = @transform_3, window_bounds = array<i64: 1, 512, 8>}]} {
    %c0 = arith.constant 0 : index
    %c0_0 = arith.constant 0 : index
    %c0_1 = arith.constant 0 : index
    %0 = vector.load %arg2[%c0, %c0_0, %c0_1] : memref<1x512x32xbf16, #tpu.memory_space<vmem>>, vector<1x512x32xbf16>
    %1 = vector.shape_cast %0 : vector<1x512x32xbf16> to vector<512x32xbf16>
    %c0_2 = arith.constant 0 : index
    %c0_3 = arith.constant 0 : index
    %c0_4 = arith.constant 0 : index
    %2 = vector.load %arg3[%c0_2, %c0_3, %c0_4] : memref<1x32x8xf32, #tpu.memory_space<vmem>>, vector<1x32x8xf32>
    %3 = vector.shape_cast %2 : vector<1x32x8xf32> to vector<32x8xf32>
    %4 = arith.truncf %3 : vector<32x8xf32> to vector<32x8xbf16>
    %cst = arith.constant dense<0.000000e+00> : vector<512x8xf32>
    %5 = tpu.matmul %1, %4, %cst {dimension_numbers = #tpu.dot_dimension_numbers<[1], [0], [0], [1], [0, 0, 1, 1], [], []>} : vector<512x32xbf16>, vector<32x8xbf16>, vector<512x8xf32> -> vector<512x8xf32>
    %c0_5 = arith.constant 0 : index
    %c0_6 = arith.constant 0 : index
    %c0_7 = arith.constant 0 : index
    %6 = vector.load %arg4[%c0_5, %c0_6, %c0_7] : memref<1x1x8xf32, #tpu.memory_space<vmem>>, vector<1x1x8xf32>
    %7 = vector.shape_cast %6 : vector<1x1x8xf32> to vector<1x8xf32>
    %8 = vector.broadcast %7 : vector<1x8xf32> to vector<512x8xf32>
    %9 = arith.addf %5, %8 : vector<512x8xf32>
    %c0_8 = arith.constant 0 : index
    %c0_9 = arith.constant 0 : index
    %c0_10 = arith.constant 0 : index
    %10 = vector.load %arg5[%c0_8, %c0_9, %c0_10] : memref<1x512x8xf32, #tpu.memory_space<vmem>>, vector<1x512x8xf32>
    %11 = vector.shape_cast %10 : vector<1x512x8xf32> to vector<512x8xf32>
    %12 = vector.shape_cast %9 : vector<512x8xf32> to vector<1x512x8xf32>
    tpu.vector_store %arg5[%c0_8, %c0_9, %c0_10], %12 {strides = array<i32>} : memref<1x512x8xf32, #tpu.memory_space<vmem>>, vector<1x512x8xf32>,
    return
  }
  func.func @transform_0(%arg0: i32, %arg1: i32) -> (i32, i32, i32) {
    %c0_i32 = arith.constant 0 : i32
    %c0_i32_0 = arith.constant 0 : i32
    return %arg0, %arg1, %c0_i32 : i32, i32, i32
  }
  func.func @transform_1(%arg0: i32, %arg1: i32) -> (i32, i32, i32) {
    %c0_i32 = arith.constant 0 : i32
    %c0_i32_0 = arith.constant 0 : i32
    %c0_i32_1 = arith.constant 0 : i32
    return %arg0, %c0_i32, %c0_i32_0 : i32, i32, i32
  }
  func.func @transform_2(%arg0: i32, %arg1: i32) -> (i32, i32, i32) {
    %c0_i32 = arith.constant 0 : i32
    %c0_i32_0 = arith.constant 0 : i32
    %c0_i32_1 = arith.constant 0 : i32
    return %arg0, %c0_i32, %c0_i32_0 : i32, i32, i32
  }
  func.func @transform_3(%arg0: i32, %arg1: i32) -> (i32, i32, i32) {
    %c0_i32 = arith.constant 0 : i32
    %c0_i32_0 = arith.constant 0 : i32
    return %arg0, %arg1, %c0_i32 : i32, i32, i32
  }
}

</mosaic_0001>

<llo_original>
// kernel: tpu_custom_call.1
$region0: #{tpu_custom_call.1}
  #allocation0 [shape = 'u32[]', space=smem, size = 0x4, offset = 0x4, fixed_abs, tag = 'smem constant byte address 0x4 - core index']
  #allocation1 [shape = 'u32[144,128]{1,0:T(1,128)}', space=vmem, size = 0x12000, scoped, tag = 'internal scratch']
  %s0 = inlined_call_operand.vmem [shape: bf16[2,512,32], index: 0, kind: input, shape index: {}]
  %s1 = inlined_call_operand.vmem [shape: f32[2,32,8], index: 1, kind: input, shape index: {}]
  %s2 = inlined_call_operand.vmem [shape: f32[2,1,8], index: 2, kind: input, shape index: {}]
  %s3 = inlined_call_operand.vmem [shape: f32[2,512,8], index: 3, kind: output, shape index: {}]
  %s4 = sld [smem:[#allocation0]]
  $region45: #{tpu_custom_call.1} parent=0
    _
  %s6 = ssub.s32 1, %s4
  %s7 = scalar_select 0, %s6, %s4
  loop: start=0, step=1, limit=4
  $region2: #{tpu_custom_call.1} parent=0 // loop_pre_header
    _
  $region3: #{tpu_custom_call.1} parent=0 // loop_header
    %s9 = sphi 0, %s13
    %p10 = scmp.ge.s32.totalorder %s9, 4
    %s16 = sphi 0, %s28
    %s17 = sphi 0, %s24
    %s18 = sphi 0, %s16
    %s19 = sphi 0, %s17
    %s20 = sphi 0, %s18
    %s21 = sphi 0, %s19
    %s33 = sphi 0, %s35
    %s36 = sphi 0, %s33
    %s37 = sphi 0, %s36
    %s53 = sphi 0, %s37
    %s59 = sphi 0, %s61
    %s62 = sphi 0, %s59
    %s63 = sphi 0, %s62
    %s79 = sphi 0, %s63
    %s85 = sphi 0, %s87
    %s88 = sphi 0, %s85
    %s89 = sphi 0, %s88
    %s105 = sphi 0, %s89
    %s113 = sphi 0, %s115
    %s116 = sphi 0, %s113
    %s117 = sphi 0, %s116
    %s133 = sphi 0, %s117
  $region4: #{tpu_custom_call.1} parent=0 // loop_header_branch
    %12 = sbr.rel (%p10) target = $region8
  $region5: #{tpu_custom_call.1} parent=0 // loop_body
    %s14 = ssub.s32 %s9, 1
    %s15 = ssub.s32 %s9, 2
    %s22 = sadd.s32 1, %s17
    %p23 = scmp.ge.s32.totalorder %s22, 1
    %s24 = scalar_select %p23, 0, %s22
    %s25 = sadd.s32 1, %s16
    %s26 = scalar_select %p23, %s25, %s16
    %p27 = scmp.ge.s32.totalorder %s26, 2
    %s28 = scalar_select %p27, 0, %s26
    %s29 = ssub.s32 %s16, %s28
    %s30 = ssub.s32 %s17, %s24
    %s31 = sor.u32 %s29, %s30
    %p32 = scmp.eq.s32.totalorder %s31, 0
    %s34 = sadd.s32 %s33, 1
    %s35 = scalar_select %p32, %s33, %s34
    %p38 = pneg %p32
    %p39 = scmp.eq.s32.totalorder %s9, 1
    %p40 = por %p38, %p39
    %p41 = scmp.ne.s32.totalorder %s33, %s36
    %p42 = scmp.eq.s32.totalorder %s9, 0
    %p43 = por %p41, %p42
    %p44 = scmp.ne.s32.totalorder %s33, %s36
    %p45 = scmp.eq.s32.totalorder %s14, 1
    %p46 = por %p44, %p45
    %p47 = scmp.ne.s32.totalorder %s36, %s37
    %p48 = scmp.eq.s32.totalorder %s14, 0
    %p49 = por %p47, %p48
    %p50 = scmp.ne.s32.totalorder %s36, %s37
    %p51 = scmp.eq.s32.totalorder %s15, 1
    %p52 = por %p50, %p51
    %p54 = scmp.ne.s32.totalorder %s37, %s53
    %p55 = scmp.eq.s32.totalorder %s15, 0
    %p56 = por %p54, %p55
    %s57 = ssub.s32 %s16, %s28
    %p58 = scmp.eq.s32.totalorder %s57, 0
    %s60 = sadd.s32 %s59, 1
    %s61 = scalar_select %p58, %s59, %s60
    %p64 = pneg %p58
    %p65 = scmp.eq.s32.totalorder %s9, 1
    %p66 = por %p64, %p65
    %p67 = scmp.ne.s32.totalorder %s59, %s62
    %p68 = scmp.eq.s32.totalorder %s9, 0
    %p69 = por %p67, %p68
    %p70 = scmp.ne.s32.totalorder %s59, %s62
    %p71 = scmp.eq.s32.totalorder %s14, 1
    %p72 = por %p70, %p71
    %p73 = scmp.ne.s32.totalorder %s62, %s63
    %p74 = scmp.eq.s32.totalorder %s14, 0
    %p75 = por %p73, %p74
    %p76 = scmp.ne.s32.totalorder %s62, %s63
    %p77 = scmp.eq.s32.totalorder %s15, 1
    %p78 = por %p76, %p77
    %p80 = scmp.ne.s32.totalorder %s63, %s79
    %p81 = scmp.eq.s32.totalorder %s15, 0
    %p82 = por %p80, %p81
    %s83 = ssub.s32 %s16, %s28
    %p84 = scmp.eq.s32.totalorder %s83, 0
    %s86 = sadd.s32 %s85, 1
    %s87 = scalar_select %p84, %s85, %s86
    %p90 = pneg %p84
    %p91 = scmp.eq.s32.totalorder %s9, 1
    %p92 = por %p90, %p91
    %p93 = scmp.ne.s32.totalorder %s85, %s88
    %p94 = scmp.eq.s32.totalorder %s9, 0
    %p95 = por %p93, %p94
    %p96 = scmp.ne.s32.totalorder %s85, %s88
    %p97 = scmp.eq.s32.totalorder %s14, 1
    %p98 = por %p96, %p97
    %p99 = scmp.ne.s32.totalorder %s88, %s89
    %p100 = scmp.eq.s32.totalorder %s14, 0
    %p101 = por %p99, %p100
    %p102 = scmp.ne.s32.totalorder %s88, %s89
    %p103 = scmp.eq.s32.totalorder %s15, 1
    %p104 = por %p102, %p103
    %p106 = scmp.ne.s32.totalorder %s89, %s105
    %p107 = scmp.eq.s32.totalorder %s15, 0
    %p108 = por %p106, %p107
    %s109 = ssub.s32 %s16, %s28
    %s110 = ssub.s32 %s17, %s24
    %s111 = sor.u32 %s109, %s110
    %p112 = scmp.eq.s32.totalorder %s111, 0
    %s114 = sadd.s32 %s113, 1
    %s115 = scalar_select %p112, %s113, %s114
    %p118 = pneg %p112
    %p119 = scmp.eq.s32.totalorder %s9, 1
    %p120 = por %p118, %p119
    %p121 = scmp.ne.s32.totalorder %s113, %s116
    %p122 = scmp.eq.s32.totalorder %s9, 0
    %p123 = por %p121, %p122
    %p124 = scmp.ne.s32.totalorder %s113, %s116
    %p125 = scmp.eq.s32.totalorder %s14, 1
    %p126 = por %p124, %p125
    %p127 = scmp.ne.s32.totalorder %s116, %s117
    %p128 = scmp.eq.s32.totalorder %s14, 0
    %p129 = por %p127, %p128
    %p130 = scmp.ne.s32.totalorder %s116, %s117
    %p131 = scmp.eq.s32.totalorder %s15, 1
    %p132 = por %p130, %p131
    %p134 = scmp.ne.s32.totalorder %s117, %s133
    %p135 = scmp.eq.s32.totalorder %s15, 0
    %p136 = por %p134, %p135
    %p137 = scmp.le.s32.totalorder 1, %s9
    %p138 = scmp.lt.s32.totalorder %s9, 3
    %p139 = pnand %p137, %p138
    %p140 = pneg %p139
    // Predicated region
    $region9: #{tpu_custom_call.1} parent=5 // pred_check
      _
    $region10: #{tpu_custom_call.1} parent=5 // pred_check_branch
      %142 = sbr.rel (%p139) target = $region12
    $region11: #{tpu_custom_call.1} parent=5 // pred_region
      %s143 = ssub.s32 %s9, 1
    $region12: #{tpu_custom_call.1} parent=5 // pred_fallthru
      _
    %p144 = scmp.lt.s32.totalorder %s9, 2
    // Predicated region
    $region13: #{tpu_custom_call.1} parent=5 // pred_check
      %p145 = pneg %p144
    $region14: #{tpu_custom_call.1} parent=5 // pred_check_branch
      %147 = sbr.rel (%p145) target = $region16
    $region15: #{tpu_custom_call.1} parent=5 // pred_region
      // Predicated region
      $region17: #{tpu_custom_call.1} parent=15 // pred_check
        %p148 = pneg %p43
      $region18: #{tpu_custom_call.1} parent=15 // pred_check_branch
        %150 = sbr.rel (%p148) target = $region20
      $region19: #{tpu_custom_call.1} parent=15 // pred_region
        %s151 = smul.u32 64, %s17
        %p152 = scmp.lt.s32.totalorder %s16, 1
        %s153 = scalar_select %p152, %s16, 1
        %p154 = scmp.lt.s32.totalorder %s151, 63
        %s155 = scalar_select %p154, %s151, 63
        %s156 = smul.addr %s153, 64
        %s157 = sadd.s32 %s155, %s156
        %s158 = smul.addr %s157, 4
        %s159 = scalar_lea.vmem %s0, %s158
        %s160 = smul.u32 64, %s17
      $region20: #{tpu_custom_call.1} parent=15 // pred_fallthru
        _
      // Predicated region
      $region21: #{tpu_custom_call.1} parent=15 // pred_check
        %p161 = pneg %p69
      $region22: #{tpu_custom_call.1} parent=15 // pred_check_branch
        %163 = sbr.rel (%p161) target = $region24
      $region23: #{tpu_custom_call.1} parent=15 // pred_region
        %p164 = scmp.lt.s32.totalorder %s16, 1
        %s165 = scalar_select %p164, %s16, 1
        %s166 = smul.addr %s165, 4
        %s167 = smul.addr %s166, 8
        %s168 = scalar_lea.vmem %s1, %s167
      $region24: #{tpu_custom_call.1} parent=15 // pred_fallthru
        _
      // Predicated region
      $region25: #{tpu_custom_call.1} parent=15 // pred_check
        %p169 = pneg %p95
      $region26: #{tpu_custom_call.1} parent=15 // pred_check_branch
        %171 = sbr.rel (%p169) target = $region28
      $region27: #{tpu_custom_call.1} parent=15 // pred_region
        %p172 = scmp.lt.s32.totalorder %s16, 1
        %s173 = scalar_select %p172, %s16, 1
        %s174 = scalar_lea.vmem %s2, %s173
      $region28: #{tpu_custom_call.1} parent=15 // pred_fallthru
        _
    $region16: #{tpu_custom_call.1} parent=5 // pred_fallthru
      _
    %p175 = scmp.le.s32.totalorder 1, %s9
    %p176 = scmp.lt.s32.totalorder %s9, 3
    %p177 = pnand %p175, %p176
    %p178 = pneg %p177
    // Predicated region
    $region29: #{tpu_custom_call.1} parent=5 // pred_check
      _
    $region30: #{tpu_custom_call.1} parent=5 // pred_check_branch
      %180 = sbr.rel (%p177) target = $region32
    $region31: #{tpu_custom_call.1} parent=5 // pred_region
      %s181 = ssub.s32 %s9, 1
      %s182 = smul.u32 64, %s19
      %p183 = scmp.lt.s32.totalorder %s18, 1
      %s184 = scalar_select %p183, %s18, 1
      %p185 = scmp.lt.s32.totalorder %s182, 63
      %s186 = scalar_select %p185, %s182, 63
      %s187 = smul.addr %s184, 64
      %s188 = sadd.s32 %s186, %s187
      %s189 = smul.addr %s188, 4
      %s190 = scalar_lea.vmem %s0, %s189
      %p191 = pneg %p49
      %p192 = pneg %p46
      %p193 = scmp.lt.s32.totalorder %s18, 1
      %s194 = scalar_select %p193, %s18, 1
      %s195 = smul.addr %s194, 4
      %s196 = smul.addr %s195, 8
      %s197 = scalar_lea.vmem %s1, %s196
      %p198 = pneg %p75
      %p199 = pneg %p72
      %p200 = scmp.lt.s32.totalorder %s18, 1
      %s201 = scalar_select %p200, %s18, 1
      %s202 = scalar_lea.vmem %s2, %s201
      %p203 = pneg %p101
      %p204 = pneg %p98
      %p205 = pneg %p129
      %p206 = pneg %p126
      %s207 = smul.u32 64, %s19
      %p208 = scmp.lt.s32.totalorder %s18, 1
      %s209 = scalar_select %p208, %s18, 1
      %p210 = scmp.lt.s32.totalorder %s207, 63
      %s211 = scalar_select %p210, %s207, 63
      %s212 = smul.addr %s209, 64
      %s213 = sadd.s32 %s211, %s212
      %s214 = smul.addr %s213, 8
      %s215 = scalar_lea.vmem %s3, %s214
      %s216 = smul.u32 64, %s19
      %p217 = scmp.lt.s32.totalorder %s18, 1
      %s218 = scalar_select %p217, %s18, 1
      %p219 = scmp.lt.s32.totalorder %s216, 63
      %s220 = scalar_select %p219, %s216, 63
      %s221 = smul.addr %s218, 64
      %s222 = sadd.s32 %s220, %s221
      %s223 = smul.addr %s222, 4
      %s224 = scalar_lea.vmem %s0, %s223
      %s225 = smul.u32 64, %s19
      %p226 = scmp.lt.s32.totalorder %s18, 1
      %s227 = scalar_select %p226, %s18, 1
      %s228 = smul.addr %s227, 4
      %s229 = smul.addr %s228, 8
      %s230 = scalar_lea.vmem %s1, %s229
      %p231 = scmp.lt.s32.totalorder %s18, 1
      %s232 = scalar_select %p231, %s18, 1
      %s233 = scalar_lea.vmem %s2, %s232
      %s234 = smul.u32 64, %s19
      %p235 = scmp.lt.s32.totalorder %s18, 1
      %s236 = scalar_select %p235, %s18, 1
      %p237 = scmp.lt.s32.totalorder %s234, 63
      %s238 = scalar_select %p237, %s234, 63
      %s239 = smul.addr %s236, 64
      %s240 = sadd.s32 %s238, %s239
      %s241 = smul.addr %s240, 8
      %s242 = scalar_lea.vmem %s3, %s241
      %s243 = smul.u32 64, %s19
      %v245 = vld [vmem:[%s224] sm:$0xf]
      %v246 = vld [vmem:[%s224 + $0x4] sm:$0xf]
      %v247 = vld [vmem:[%s224 + $0x8] sm:$0xf]
      %v248 = vld [vmem:[%s224 + $0xc] sm:$0xf]
      %v249 = vld [vmem:[%s224 + $0x10] sm:$0xf]
      %v250 = vld [vmem:[%s224 + $0x14] sm:$0xf]
      %v251 = vld [vmem:[%s224 + $0x18] sm:$0xf]
      %v252 = vld [vmem:[%s224 + $0x1c] sm:$0xf]
      %v253 = vld [vmem:[%s224 + $0x20] sm:$0xf]
      %v254 = vld [vmem:[%s224 + $0x24] sm:$0xf]
      %v255 = vld [vmem:[%s224 + $0x28] sm:$0xf]
      %v256 = vld [vmem:[%s224 + $0x2c] sm:$0xf]
      %v257 = vld [vmem:[%s224 + $0x30] sm:$0xf]
      %v258 = vld [vmem:[%s224 + $0x34] sm:$0xf]
      %v259 = vld [vmem:[%s224 + $0x38] sm:$0xf]
      %v260 = vld [vmem:[%s224 + $0x3c] sm:$0xf]
      %v261 = vld [vmem:[%s224 + $0x40] sm:$0xf]
      %v262 = vld [vmem:[%s224 + $0x44] sm:$0xf]
      %v263 = vld [vmem:[%s224 + $0x48] sm:$0xf]
      %v264 = vld [vmem:[%s224 + $0x4c] sm:$0xf]
      %v265 = vld [vmem:[%s224 + $0x50] sm:$0xf]
      %v266 = vld [vmem:[%s224 + $0x54] sm:$0xf]
      %v267 = vld [vmem:[%s224 + $0x58] sm:$0xf]
      %v268 = vld [vmem:[%s224 + $0x5c] sm:$0xf]
      %v269 = vld [vmem:[%s224 + $0x60] sm:$0xf]
      %v270 = vld [vmem:[%s224 + $0x64] sm:$0xf]
      %v271 = vld [vmem:[%s224 + $0x68] sm:$0xf]
      %v272 = vld [vmem:[%s224 + $0x6c] sm:$0xf]
      %v273 = vld [vmem:[%s224 + $0x70] sm:$0xf]
      %v274 = vld [vmem:[%s224 + $0x74] sm:$0xf]
      %v275 = vld [vmem:[%s224 + $0x78] sm:$0xf]
      %v276 = vld [vmem:[%s224 + $0x7c] sm:$0xf]
      %v277 = vld [vmem:[%s224 + $0x80] sm:$0xf]
      %v278 = vld [vmem:[%s224 + $0x84] sm:$0xf]
      %v279 = vld [vmem:[%s224 + $0x88] sm:$0xf]
      %v280 = vld [vmem:[%s224 + $0x8c] sm:$0xf]
      %v281 = vld [vmem:[%s224 + $0x90] sm:$0xf]
      %v282 = vld [vmem:[%s224 + $0x94] sm:$0xf]
      %v283 = vld [vmem:[%s224 + $0x98] sm:$0xf]
      %v284 = vld [vmem:[%s224 + $0x9c] sm:$0xf]
      %v285 = vld [vmem:[%s224 + $0xa0] sm:$0xf]
      %v286 = vld [vmem:[%s224 + $0xa4] sm:$0xf]
      %v287 = vld [vmem:[%s224 + $0xa8] sm:$0xf]
      %v288 = vld [vmem:[%s224 + $0xac] sm:$0xf]
      %v289 = vld [vmem:[%s224 + $0xb0] sm:$0xf]
      %v290 = vld [vmem:[%s224 + $0xb4] sm:$0xf]
      %v291 = vld [vmem:[%s224 + $0xb8] sm:$0xf]
      %v292 = vld [vmem:[%s224 + $0xbc] sm:$0xf]
      %v293 = vld [vmem:[%s224 + $0xc0] sm:$0xf]
      %v294 = vld [vmem:[%s224 + $0xc4] sm:$0xf]
      %v295 = vld [vmem:[%s224 + $0xc8] sm:$0xf]
      %v296 = vld [vmem:[%s224 + $0xcc] sm:$0xf]
      %v297 = vld [vmem:[%s224 + $0xd0] sm:$0xf]
      %v298 = vld [vmem:[%s224 + $0xd4] sm:$0xf]
      %v299 = vld [vmem:[%s224 + $0xd8] sm:$0xf]
      %v300 = vld [vmem:[%s224 + $0xdc] sm:$0xf]
      %v301 = vld [vmem:[%s224 + $0xe0] sm:$0xf]
      %v302 = vld [vmem:[%s224 + $0xe4] sm:$0xf]
      %v303 = vld [vmem:[%s224 + $0xe8] sm:$0xf]
      %v304 = vld [vmem:[%s224 + $0xec] sm:$0xf]
      %v305 = vld [vmem:[%s224 + $0xf0] sm:$0xf]
      %v306 = vld [vmem:[%s224 + $0xf4] sm:$0xf]
      %v307 = vld [vmem:[%s224 + $0xf8] sm:$0xf]
      %v308 = vld [vmem:[%s224 + $0xfc] sm:$0xf]
      %v309 = vld [vmem:[%s230] sm:$0xff]
      %v310 = vld [vmem:[%s230 + $0x8] sm:$0xff]
      %v311 = vld [vmem:[%s230 + $0x10] sm:$0xff]
      %v312 = vld [vmem:[%s230 + $0x18] sm:$0xff]
      %v313 = vpack.c.bf16 %v310, %v309
      %v314 = vpack.c.bf16 %v312, %v311
      %v315 = vld [vmem:[%s233] sm:$0x1]
      %v317 = vlaneseq
      %v318 = vshrl.u32 %v317, 7
      %v319 = vsub.s32 0, %v318
      %v320 = vrot.slane %v315, %v319
      %v386 = vunpack.c.l.b16 %v245
      %v387 = vunpack.c.l.b16 %v246
      %v388 = vunpack.c.l.b16 %v247
      %v389 = vunpack.c.l.b16 %v248
      %v390 = vunpack.c.l.b16 %v249
      %v391 = vunpack.c.l.b16 %v250
      %v392 = vunpack.c.l.b16 %v251
      %v393 = vunpack.c.l.b16 %v252
      %v394 = vunpack.c.l.b16 %v253
      %v395 = vunpack.c.l.b16 %v254
      %v396 = vunpack.c.l.b16 %v255
      %v397 = vunpack.c.l.b16 %v256
      %v398 = vunpack.c.l.b16 %v257
      %v399 = vunpack.c.l.b16 %v258
      %v400 = vunpack.c.l.b16 %v259
      %v401 = vunpack.c.l.b16 %v260
      %v402 = vunpack.c.l.b16 %v261
      %v403 = vunpack.c.l.b16 %v262
      %v404 = vunpack.c.l.b16 %v263
      %v405 = vunpack.c.l.b16 %v264
      %v406 = vunpack.c.l.b16 %v265
      %v407 = vunpack.c.l.b16 %v266
      %v408 = vunpack.c.l.b16 %v267
      %v409 = vunpack.c.l.b16 %v268
      %v410 = vunpack.c.l.b16 %v269
      %v411 = vunpack.c.l.b16 %v270
      %v412 = vunpack.c.l.b16 %v271
      %v413 = vunpack.c.l.b16 %v272
      %v414 = vunpack.c.l.b16 %v273
      %v415 = vunpack.c.l.b16 %v274
      %v416 = vunpack.c.l.b16 %v275
      %v417 = vunpack.c.l.b16 %v276
      %v418 = vunpack.c.l.b16 %v277
      %v419 = vunpack.c.l.b16 %v278
      %v420 = vunpack.c.l.b16 %v279
      %v421 = vunpack.c.l.b16 %v280
      %v422 = vunpack.c.l.b16 %v281
      %v423 = vunpack.c.l.b16 %v282
      %v424 = vunpack.c.l.b16 %v283
      %v425 = vunpack.c.l.b16 %v284
      %v426 = vunpack.c.l.b16 %v285
      %v427 = vunpack.c.l.b16 %v286
      %v428 = vunpack.c.l.b16 %v287
      %v429 = vunpack.c.l.b16 %v288
      %v430 = vunpack.c.l.b16 %v289
      %v431 = vunpack.c.l.b16 %v290
      %v432 = vunpack.c.l.b16 %v291
      %v433 = vunpack.c.l.b16 %v292
      %v434 = vunpack.c.l.b16 %v293
      %v435 = vunpack.c.l.b16 %v294
      %v436 = vunpack.c.l.b16 %v295
      %v437 = vunpack.c.l.b16 %v296
      %v438 = vunpack.c.l.b16 %v297
      %v439 = vunpack.c.l.b16 %v298
      %v440 = vunpack.c.l.b16 %v299
      %v441 = vunpack.c.l.b16 %v300
      %v442 = vunpack.c.l.b16 %v301
      %v443 = vunpack.c.l.b16 %v302
      %v444 = vunpack.c.l.b16 %v303
      %v445 = vunpack.c.l.b16 %v304
      %v446 = vunpack.c.l.b16 %v305
      %v447 = vunpack.c.l.b16 %v306
      %v448 = vunpack.c.l.b16 %v307
      %v449 = vunpack.c.l.b16 %v308
      %v450 = vpack.c.b16 %v387, %v386
      %v451 = vpack.c.b16 %v389, %v388
      %v452 = vpack.c.b16 %v391, %v390
      %v453 = vpack.c.b16 %v393, %v392
      %v454 = vpack.c.b16 %v395, %v394
      %v455 = vpack.c.b16 %v397, %v396
      %v456 = vpack.c.b16 %v399, %v398
      %v457 = vpack.c.b16 %v401, %v400
      %v458 = vpack.c.b16 %v403, %v402
      %v459 = vpack.c.b16 %v405, %v404
      %v460 = vpack.c.b16 %v407, %v406
      %v461 = vpack.c.b16 %v409, %v408
      %v462 = vpack.c.b16 %v411, %v410
      %v463 = vpack.c.b16 %v413, %v412
      %v464 = vpack.c.b16 %v415, %v414
      %v465 = vpack.c.b16 %v417, %v416
      %v466 = vpack.c.b16 %v419, %v418
      %v467 = vpack.c.b16 %v421, %v420
      %v468 = vpack.c.b16 %v423, %v422
      %v469 = vpack.c.b16 %v425, %v424
      %v470 = vpack.c.b16 %v427, %v426
      %v471 = vpack.c.b16 %v429, %v428
      %v472 = vpack.c.b16 %v431, %v430
      %v473 = vpack.c.b16 %v433, %v432
      %v474 = vpack.c.b16 %v435, %v434
      %v475 = vpack.c.b16 %v437, %v436
      %v476 = vpack.c.b16 %v439, %v438
      %v477 = vpack.c.b16 %v441, %v440
      %v478 = vpack.c.b16 %v443, %v442
      %v479 = vpack.c.b16 %v445, %v444
      %v480 = vpack.c.b16 %v447, %v446
      %v481 = vpack.c.b16 %v449, %v448
      %vm482 = vcmask 261120
      %v484 = vsel %vm482, %v450, 0
      %v487 = vsel %vm482, %v451, 0
      %v490 = vsel %vm482, %v452, 0
      %v493 = vsel %vm482, %v453, 0
      %v496 = vsel %vm482, %v454, 0
      %v499 = vsel %vm482, %v455, 0
      %v502 = vsel %vm482, %v456, 0
      %v505 = vsel %vm482, %v457, 0
      %v508 = vsel %vm482, %v458, 0
      %v511 = vsel %vm482, %v459, 0
      %v514 = vsel %vm482, %v460, 0
      %v517 = vsel %vm482, %v461, 0
      %v520 = vsel %vm482, %v462, 0
      %v523 = vsel %vm482, %v463, 0
      %v526 = vsel %vm482, %v464, 0
      %v529 = vsel %vm482, %v465, 0
      %v532 = vsel %vm482, %v466, 0
      %v535 = vsel %vm482, %v467, 0
      %v538 = vsel %vm482, %v468, 0
      %v541 = vsel %vm482, %v469, 0
      %v544 = vsel %vm482, %v470, 0
      %v547 = vsel %vm482, %v471, 0
      %v550 = vsel %vm482, %v472, 0
      %v553 = vsel %vm482, %v473, 0
      %v556 = vsel %vm482, %v474, 0
      %v559 = vsel %vm482, %v475, 0
      %v562 = vsel %vm482, %v476, 0
      %v565 = vsel %vm482, %v477, 0
      %v568 = vsel %vm482, %v478, 0
      %v571 = vsel %vm482, %v479, 0
      %v574 = vsel %vm482, %v480, 0
      %v577 = vsel %vm482, %v481, 0
      %579 = vmatprep.subr.bf16.mxu0 0
      %580 = vmatpush1.bf16.msra.mxu0 %v313
      %581 = vmatprep.subr.bf16.mxu0 0
      %582 = vmatpush1.bf16.msra.mxu0 %v314
      %583 = vmatprep.subr.bf16.mxu0 0
      %584 = vmatpush1.bf16.msra.mxu0 0
      %585 = vmatprep.subr.bf16.mxu0 0
      %586 = vmatpush1.bf16.msra.mxu0 0
      %587 = vmatprep.subr.bf16.mxu0 0
      %588 = vmatpush1.bf16.msra.mxu0 0
      %589 = vmatprep.subr.bf16.mxu0 0
      %590 = vmatpush1.bf16.msra.mxu0 0
      %591 = vmatprep.subr.bf16.mxu0 0
      %592 = vmatpush1.bf16.msra.mxu0 0
      %593 = vmatprep.subr.bf16.mxu0 0
      %594 = vmatpush1.bf16.msra.mxu0 0
      %595 = vmatprep.subr.bf16.mxu0 0
      %596 = vmatpush1.bf16.msra.mxu0 0
      %597 = vmatprep.subr.bf16.mxu0 0
      %598 = vmatpush1.bf16.msra.mxu0 0
      %599 = vmatprep.subr.bf16.mxu0 0
      %600 = vmatpush1.bf16.msra.mxu0 0
      %601 = vmatprep.subr.bf16.mxu0 0
      %602 = vmatpush1.bf16.msra.mxu0 0
      %603 = vmatprep.subr.bf16.mxu0 0
      %604 = vmatpush1.bf16.msra.mxu0 0
      %605 = vmatprep.subr.bf16.mxu0 0
      %606 = vmatpush1.bf16.msra.mxu0 0
      %607 = vmatprep.subr.bf16.mxu0 0
      %608 = vmatpush1.bf16.msra.mxu0 0
      %609 = vmatprep.subr.bf16.mxu0 0
      %610 = vmatpush1.bf16.msra.mxu0 0
      %611 = vmatprep.mubr.bf16.mxu0 0
      %612 = vmatmul.mubr.bf16.gmra.mrb[0].mxu0 %v484
      %v613 = vpop.f32.mrb[0].mxu0
      %v614 = vadd.f32 %v320, %v613
      %v615 = vpop.f32.mrb[0].mxu0
      %v616 = vpop.f32.mrb[0].mxu0
      %v617 = vadd.f32 %v320, %v616
      %v618 = vpop.f32.mrb[0].mxu0
      %619 = vmatprep.mubr.bf16.mxu0 0
      %620 = vmatmul.mubr.bf16.gmra.mrb[0].mxu0 %v487
      %v621 = vpop.f32.mrb[0].mxu0
      %v622 = vadd.f32 %v320, %v621
      %v623 = vpop.f32.mrb[0].mxu0
      %v624 = vpop.f32.mrb[0].mxu0
      %v625 = vadd.f32 %v320, %v624
      %v626 = vpop.f32.mrb[0].mxu0
      %627 = vmatprep.mubr.bf16.mxu0 0
      %628 = vmatmul.mubr.bf16.gmra.mrb[0].mxu0 %v490
      %v629 = vpop.f32.mrb[0].mxu0
      %v630 = vadd.f32 %v320, %v629
      %v631 = vpop.f32.mrb[0].mxu0
      %v632 = vpop.f32.mrb[0].mxu0
      %v633 = vadd.f32 %v320, %v632
      %v634 = vpop.f32.mrb[0].mxu0
      %635 = vmatprep.mubr.bf16.mxu0 0
      %636 = vmatmul.mubr.bf16.gmra.mrb[0].mxu0 %v493
      %v637 = vpop.f32.mrb[0].mxu0
      %v638 = vadd.f32 %v320, %v637
      %v639 = vpop.f32.mrb[0].mxu0
      %v640 = vpop.f32.mrb[0].mxu0
      %v641 = vadd.f32 %v320, %v640
      %v642 = vpop.f32.mrb[0].mxu0
      %643 = vmatprep.mubr.bf16.mxu0 0
      %644 = vmatmul.mubr.bf16.gmra.mrb[0].mxu0 %v496
      %v645 = vpop.f32.mrb[0].mxu0
      %v646 = vadd.f32 %v320, %v645
      %v647 = vpop.f32.mrb[0].mxu0
      %v648 = vpop.f32.mrb[0].mxu0
      %v649 = vadd.f32 %v320, %v648
      %v650 = vpop.f32.mrb[0].mxu0
      %651 = vmatprep.mubr.bf16.mxu0 0
      %652 = vmatmul.mubr.bf16.gmra.mrb[0].mxu0 %v499
      %v653 = vpop.f32.mrb[0].mxu0
      %v654 = vadd.f32 %v320, %v653
      %v655 = vpop.f32.mrb[0].mxu0
      %v656 = vpop.f32.mrb[0].mxu0
      %v657 = vadd.f32 %v320, %v656
      %v658 = vpop.f32.mrb[0].mxu0
      %659 = vmatprep.mubr.bf16.mxu0 0
      %660 = vmatmul.mubr.bf16.gmra.mrb[0].mxu0 %v502
      %v661 = vpop.f32.mrb[0].mxu0
      %v662 = vadd.f32 %v320, %v661
      %v663 = vpop.f32.mrb[0].mxu0
      %v664 = vpop.f32.mrb[0].mxu0
      %v665 = vadd.f32 %v320, %v664
      %v666 = vpop.f32.mrb[0].mxu0
      %667 = vmatprep.mubr.bf16.mxu0 0
      %668 = vmatmul.mubr.bf16.gmra.mrb[0].mxu0 %v505
      %v669 = vpop.f32.mrb[0].mxu0
      %v670 = vadd.f32 %v320, %v669
      %v671 = vpop.f32.mrb[0].mxu0
      %v672 = vpop.f32.mrb[0].mxu0
      %v673 = vadd.f32 %v320, %v672
      %v674 = vpop.f32.mrb[0].mxu0
      %675 = vmatprep.mubr.bf16.mxu0 0
      %676 = vmatmul.mubr.bf16.gmra.mrb[0].mxu0 %v508
      %v677 = vpop.f32.mrb[0].mxu0
      %v678 = vadd.f32 %v320, %v677
      %v679 = vpop.f32.mrb[0].mxu0
      %v680 = vpop.f32.mrb[0].mxu0
      %v681 = vadd.f32 %v320, %v680
      %v682 = vpop.f32.mrb[0].mxu0
      %683 = vmatprep.mubr.bf16.mxu0 0
      %684 = vmatmul.mubr.bf16.gmra.mrb[0].mxu0 %v511
      %v685 = vpop.f32.mrb[0].mxu0
      %v686 = vadd.f32 %v320, %v685
      %v687 = vpop.f32.mrb[0].mxu0
      %v688 = vpop.f32.mrb[0].mxu0
      %v689 = vadd.f32 %v320, %v688
      %v690 = vpop.f32.mrb[0].mxu0
      %691 = vmatprep.mubr.bf16.mxu0 0
      %692 = vmatmul.mubr.bf16.gmra.mrb[0].mxu0 %v514
      %v693 = vpop.f32.mrb[0].mxu0
      %v694 = vadd.f32 %v320, %v693
      %v695 = vpop.f32.mrb[0].mxu0
      %v696 = vpop.f32.mrb[0].mxu0
      %v697 = vadd.f32 %v320, %v696
      %v698 = vpop.f32.mrb[0].mxu0
      %699 = vmatprep.mubr.bf16.mxu0 0
      %700 = vmatmul.mubr.bf16.gmra.mrb[0].mxu0 %v517
      %v701 = vpop.f32.mrb[0].mxu0
      %v702 = vadd.f32 %v320, %v701
      %v703 = vpop.f32.mrb[0].mxu0
      %v704 = vpop.f32.mrb[0].mxu0
      %v705 = vadd.f32 %v320, %v704
      %v706 = vpop.f32.mrb[0].mxu0
      %707 = vmatprep.mubr.bf16.mxu0 0
      %708 = vmatmul.mubr.bf16.gmra.mrb[0].mxu0 %v520
      %v709 = vpop.f32.mrb[0].mxu0
      %v710 = vadd.f32 %v320, %v709
      %v711 = vpop.f32.mrb[0].mxu0
      %v712 = vpop.f32.mrb[0].mxu0
      %v713 = vadd.f32 %v320, %v712
      %v714 = vpop.f32.mrb[0].mxu0
      %715 = vmatprep.mubr.bf16.mxu0 0
      %716 = vmatmul.mubr.bf16.gmra.mrb[0].mxu0 %v523
      %v717 = vpop.f32.mrb[0].mxu0
      %v718 = vadd.f32 %v320, %v717
      %v719 = vpop.f32.mrb[0].mxu0
      %v720 = vpop.f32.mrb[0].mxu0
      %v721 = vadd.f32 %v320, %v720
      %v722 = vpop.f32.mrb[0].mxu0
      %723 = vmatprep.mubr.bf16.mxu0 0
      %724 = vmatmul.mubr.bf16.gmra.mrb[0].mxu0 %v526
      %v725 = vpop.f32.mrb[0].mxu0
      %v726 = vadd.f32 %v320, %v725
      %v727 = vpop.f32.mrb[0].mxu0
      %v728 = vpop.f32.mrb[0].mxu0
      %v729 = vadd.f32 %v320, %v728
      %v730 = vpop.f32.mrb[0].mxu0
      %731 = vmatprep.mubr.bf16.mxu0 0
      %732 = vmatmul.mubr.bf16.gmra.mrb[0].mxu0 %v529
      %v733 = vpop.f32.mrb[0].mxu0
      %v734 = vadd.f32 %v320, %v733
      %v735 = vpop.f32.mrb[0].mxu0
      %v736 = vpop.f32.mrb[0].mxu0
      %v737 = vadd.f32 %v320, %v736
      %v738 = vpop.f32.mrb[0].mxu0
      %739 = vmatprep.mubr.bf16.mxu0 0
      %740 = vmatmul.mubr.bf16.gmra.mrb[0].mxu0 %v532
      %v741 = vpop.f32.mrb[0].mxu0
      %v742 = vadd.f32 %v320, %v741
      %v743 = vpop.f32.mrb[0].mxu0
      %v744 = vpop.f32.mrb[0].mxu0
      %v745 = vadd.f32 %v320, %v744
      %v746 = vpop.f32.mrb[0].mxu0
      %747 = vmatprep.mubr.bf16.mxu0 0
      %748 = vmatmul.mubr.bf16.gmra.mrb[0].mxu0 %v535
      %v749 = vpop.f32.mrb[0].mxu0
      %v750 = vadd.f32 %v320, %v749
      %v751 = vpop.f32.mrb[0].mxu0
      %v752 = vpop.f32.mrb[0].mxu0
      %v753 = vadd.f32 %v320, %v752
      %v754 = vpop.f32.mrb[0].mxu0
      %755 = vmatprep.mubr.bf16.mxu0 0
      %756 = vmatmul.mubr.bf16.gmra.mrb[0].mxu0 %v538
      %v757 = vpop.f32.mrb[0].mxu0
      %v758 = vadd.f32 %v320, %v757
      %v759 = vpop.f32.mrb[0].mxu0
      %v760 = vpop.f32.mrb[0].mxu0
      %v761 = vadd.f32 %v320, %v760
      %v762 = vpop.f32.mrb[0].mxu0
      %763 = vmatprep.mubr.bf16.mxu0 0
      %764 = vmatmul.mubr.bf16.gmra.mrb[0].mxu0 %v541
      %v765 = vpop.f32.mrb[0].mxu0
      %v766 = vadd.f32 %v320, %v765
      %v767 = vpop.f32.mrb[0].mxu0
      %v768 = vpop.f32.mrb[0].mxu0
      %v769 = vadd.f32 %v320, %v768
      %v770 = vpop.f32.mrb[0].mxu0
      %771 = vmatprep.mubr.bf16.mxu0 0
      %772 = vmatmul.mubr.bf16.gmra.mrb[0].mxu0 %v544
      %v773 = vpop.f32.mrb[0].mxu0
      %v774 = vadd.f32 %v320, %v773
      %v775 = vpop.f32.mrb[0].mxu0
      %v776 = vpop.f32.mrb[0].mxu0
      %v777 = vadd.f32 %v320, %v776
      %v778 = vpop.f32.mrb[0].mxu0
      %779 = vmatprep.mubr.bf16.mxu0 0
      %780 = vmatmul.mubr.bf16.gmra.mrb[0].mxu0 %v547
      %v781 = vpop.f32.mrb[0].mxu0
      %v782 = vadd.f32 %v320, %v781
      %v783 = vpop.f32.mrb[0].mxu0
      %v784 = vpop.f32.mrb[0].mxu0
      %v785 = vadd.f32 %v320, %v784
      %v786 = vpop.f32.mrb[0].mxu0
      %787 = vmatprep.mubr.bf16.mxu0 0
      %788 = vmatmul.mubr.bf16.gmra.mrb[0].mxu0 %v550
      %v789 = vpop.f32.mrb[0].mxu0
      %v790 = vadd.f32 %v320, %v789
      %v791 = vpop.f32.mrb[0].mxu0
      %v792 = vpop.f32.mrb[0].mxu0
      %v793 = vadd.f32 %v320, %v792
      %v794 = vpop.f32.mrb[0].mxu0
      %795 = vmatprep.mubr.bf16.mxu0 0
      %796 = vmatmul.mubr.bf16.gmra.mrb[0].mxu0 %v553
      %v797 = vpop.f32.mrb[0].mxu0
      %v798 = vadd.f32 %v320, %v797
      %v799 = vpop.f32.mrb[0].mxu0
      %v800 = vpop.f32.mrb[0].mxu0
      %v801 = vadd.f32 %v320, %v800
      %v802 = vpop.f32.mrb[0].mxu0
      %803 = vmatprep.mubr.bf16.mxu0 0
      %804 = vmatmul.mubr.bf16.gmra.mrb[0].mxu0 %v556
      %v805 = vpop.f32.mrb[0].mxu0
      %v806 = vadd.f32 %v320, %v805
      %v807 = vpop.f32.mrb[0].mxu0
      %v808 = vpop.f32.mrb[0].mxu0
      %v809 = vadd.f32 %v320, %v808
      %v810 = vpop.f32.mrb[0].mxu0
      %811 = vmatprep.mubr.bf16.mxu0 0
      %812 = vmatmul.mubr.bf16.gmra.mrb[0].mxu0 %v559
      %v813 = vpop.f32.mrb[0].mxu0
      %v814 = vadd.f32 %v320, %v813
      %v815 = vpop.f32.mrb[0].mxu0
      %v816 = vpop.f32.mrb[0].mxu0
      %v817 = vadd.f32 %v320, %v816
      %v818 = vpop.f32.mrb[0].mxu0
      %819 = vmatprep.mubr.bf16.mxu0 0
      %820 = vmatmul.mubr.bf16.gmra.mrb[0].mxu0 %v562
      %v821 = vpop.f32.mrb[0].mxu0
      %v822 = vadd.f32 %v320, %v821
      %v823 = vpop.f32.mrb[0].mxu0
      %v824 = vpop.f32.mrb[0].mxu0
      %v825 = vadd.f32 %v320, %v824
      %v826 = vpop.f32.mrb[0].mxu0
      %827 = vmatprep.mubr.bf16.mxu0 0
      %828 = vmatmul.mubr.bf16.gmra.mrb[0].mxu0 %v565
      %v829 = vpop.f32.mrb[0].mxu0
      %v830 = vadd.f32 %v320, %v829
      %v831 = vpop.f32.mrb[0].mxu0
      %v832 = vpop.f32.mrb[0].mxu0
      %v833 = vadd.f32 %v320, %v832
      %v834 = vpop.f32.mrb[0].mxu0
      %835 = vmatprep.mubr.bf16.mxu0 0
      %836 = vmatmul.mubr.bf16.gmra.mrb[0].mxu0 %v568
      %v837 = vpop.f32.mrb[0].mxu0
      %v838 = vadd.f32 %v320, %v837
      %v839 = vpop.f32.mrb[0].mxu0
      %v840 = vpop.f32.mrb[0].mxu0
      %v841 = vadd.f32 %v320, %v840
      %v842 = vpop.f32.mrb[0].mxu0
      %843 = vmatprep.mubr.bf16.mxu0 0
      %844 = vmatmul.mubr.bf16.gmra.mrb[0].mxu0 %v571
      %v845 = vpop.f32.mrb[0].mxu0
      %v846 = vadd.f32 %v320, %v845
      %v847 = vpop.f32.mrb[0].mxu0
      %v848 = vpop.f32.mrb[0].mxu0
      %v849 = vadd.f32 %v320, %v848
      %v850 = vpop.f32.mrb[0].mxu0
      %851 = vmatprep.mubr.bf16.mxu0 0
      %852 = vmatmul.mubr.bf16.gmra.mrb[0].mxu0 %v574
      %v853 = vpop.f32.mrb[0].mxu0
      %v854 = vadd.f32 %v320, %v853
      %v855 = vpop.f32.mrb[0].mxu0
      %v856 = vpop.f32.mrb[0].mxu0
      %v857 = vadd.f32 %v320, %v856
      %v858 = vpop.f32.mrb[0].mxu0
      %859 = vmatprep.mubr.bf16.mxu0 0
      %860 = vmatmul.mubr.bf16.gmra.mrb[0].mxu0 %v577
      %v861 = vpop.f32.mrb[0].mxu0
      %v862 = vadd.f32 %v320, %v861
      %v863 = vpop.f32.mrb[0].mxu0
      %v864 = vpop.f32.mrb[0].mxu0
      %v865 = vadd.f32 %v320, %v864
      %v866 = vpop.f32.mrb[0].mxu0
      %867 = vdwg.mxu0
      %vm868 = vcmask 64512
      %869 = vst.msk [vmem:[%s242] sm:$0xff] %vm868, %v614
      %870 = vst.msk [vmem:[%s242 + $0x8] sm:$0xff] %vm868, %v617
      %871 = vst.msk [vmem:[%s242 + $0x10] sm:$0xff] %vm868, %v622
      %872 = vst.msk [vmem:[%s242 + $0x18] sm:$0xff] %vm868, %v625
      %873 = vst.msk [vmem:[%s242 + $0x20] sm:$0xff] %vm868, %v630
      %874 = vst.msk [vmem:[%s242 + $0x28] sm:$0xff] %vm868, %v633
      %875 = vst.msk [vmem:[%s242 + $0x30] sm:$0xff] %vm868, %v638
      %876 = vst.msk [vmem:[%s242 + $0x38] sm:$0xff] %vm868, %v641
      %877 = vst.msk [vmem:[%s242 + $0x40] sm:$0xff] %vm868, %v646
      %878 = vst.msk [vmem:[%s242 + $0x48] sm:$0xff] %vm868, %v649
      %879 = vst.msk [vmem:[%s242 + $0x50] sm:$0xff] %vm868, %v654
      %880 = vst.msk [vmem:[%s242 + $0x58] sm:$0xff] %vm868, %v657
      %881 = vst.msk [vmem:[%s242 + $0x60] sm:$0xff] %vm868, %v662
      %882 = vst.msk [vmem:[%s242 + $0x68] sm:$0xff] %vm868, %v665
      %883 = vst.msk [vmem:[%s242 + $0x70] sm:$0xff] %vm868, %v670
      %884 = vst.msk [vmem:[%s242 + $0x78] sm:$0xff] %vm868, %v673
      %885 = vst.msk [vmem:[%s242 + $0x80] sm:$0xff] %vm868, %v678
      %886 = vst.msk [vmem:[%s242 + $0x88] sm:$0xff] %vm868, %v681
      %887 = vst.msk [vmem:[%s242 + $0x90] sm:$0xff] %vm868, %v686
      %888 = vst.msk [vmem:[%s242 + $0x98] sm:$0xff] %vm868, %v689
      %889 = vst.msk [vmem:[%s242 + $0xa0] sm:$0xff] %vm868, %v694
      %890 = vst.msk [vmem:[%s242 + $0xa8] sm:$0xff] %vm868, %v697
      %891 = vst.msk [vmem:[%s242 + $0xb0] sm:$0xff] %vm868, %v702
      %892 = vst.msk [vmem:[%s242 + $0xb8] sm:$0xff] %vm868, %v705
      %893 = vst.msk [vmem:[%s242 + $0xc0] sm:$0xff] %vm868, %v710
      %894 = vst.msk [vmem:[%s242 + $0xc8] sm:$0xff] %vm868, %v713
      %895 = vst.msk [vmem:[%s242 + $0xd0] sm:$0xff] %vm868, %v718
      %896 = vst.msk [vmem:[%s242 + $0xd8] sm:$0xff] %vm868, %v721
      %897 = vst.msk [vmem:[%s242 + $0xe0] sm:$0xff] %vm868, %v726
      %898 = vst.msk [vmem:[%s242 + $0xe8] sm:$0xff] %vm868, %v729
      %899 = vst.msk [vmem:[%s242 + $0xf0] sm:$0xff] %vm868, %v734
      %900 = vst.msk [vmem:[%s242 + $0xf8] sm:$0xff] %vm868, %v737
      %901 = vst.msk [vmem:[%s242 + $0x100] sm:$0xff] %vm868, %v742
      %902 = vst.msk [vmem:[%s242 + $0x108] sm:$0xff] %vm868, %v745
      %903 = vst.msk [vmem:[%s242 + $0x110] sm:$0xff] %vm868, %v750
      %904 = vst.msk [vmem:[%s242 + $0x118] sm:$0xff] %vm868, %v753
      %905 = vst.msk [vmem:[%s242 + $0x120] sm:$0xff] %vm868, %v758
      %906 = vst.msk [vmem:[%s242 + $0x128] sm:$0xff] %vm868, %v761
      %907 = vst.msk [vmem:[%s242 + $0x130] sm:$0xff] %vm868, %v766
      %908 = vst.msk [vmem:[%s242 + $0x138] sm:$0xff] %vm868, %v769
      %909 = vst.msk [vmem:[%s242 + $0x140] sm:$0xff] %vm868, %v774
      %910 = vst.msk [vmem:[%s242 + $0x148] sm:$0xff] %vm868, %v777
      %911 = vst.msk [vmem:[%s242 + $0x150] sm:$0xff] %vm868, %v782
      %912 = vst.msk [vmem:[%s242 + $0x158] sm:$0xff] %vm868, %v785
      %913 = vst.msk [vmem:[%s242 + $0x160] sm:$0xff] %vm868, %v790
      %914 = vst.msk [vmem:[%s242 + $0x168] sm:$0xff] %vm868, %v793
      %915 = vst.msk [vmem:[%s242 + $0x170] sm:$0xff] %vm868, %v798
      %916 = vst.msk [vmem:[%s242 + $0x178] sm:$0xff] %vm868, %v801
      %917 = vst.msk [vmem:[%s242 + $0x180] sm:$0xff] %vm868, %v806
      %918 = vst.msk [vmem:[%s242 + $0x188] sm:$0xff] %vm868, %v809
      %919 = vst.msk [vmem:[%s242 + $0x190] sm:$0xff] %vm868, %v814
      %920 = vst.msk [vmem:[%s242 + $0x198] sm:$0xff] %vm868, %v817
      %921 = vst.msk [vmem:[%s242 + $0x1a0] sm:$0xff] %vm868, %v822
      %922 = vst.msk [vmem:[%s242 + $0x1a8] sm:$0xff] %vm868, %v825
      %923 = vst.msk [vmem:[%s242 + $0x1b0] sm:$0xff] %vm868, %v830
      %924 = vst.msk [vmem:[%s242 + $0x1b8] sm:$0xff] %vm868, %v833
      %925 = vst.msk [vmem:[%s242 + $0x1c0] sm:$0xff] %vm868, %v838
      %926 = vst.msk [vmem:[%s242 + $0x1c8] sm:$0xff] %vm868, %v841
      %927 = vst.msk [vmem:[%s242 + $0x1d0] sm:$0xff] %vm868, %v846
      %928 = vst.msk [vmem:[%s242 + $0x1d8] sm:$0xff] %vm868, %v849
      %929 = vst.msk [vmem:[%s242 + $0x1e0] sm:$0xff] %vm868, %v854
      %930 = vst.msk [vmem:[%s242 + $0x1e8] sm:$0xff] %vm868, %v857
      %931 = vst.msk [vmem:[%s242 + $0x1f0] sm:$0xff] %vm868, %v862
      %932 = vst.msk [vmem:[%s242 + $0x1f8] sm:$0xff] %vm868, %v865
      %s933 = smul.u32 64, %s19
      %p934 = scmp.lt.s32.totalorder %s18, 1
      %s935 = scalar_select %p934, %s18, 1
      %p936 = scmp.lt.s32.totalorder %s933, 63
      %s937 = scalar_select %p936, %s933, 63
      %s938 = smul.addr %s935, 64
      %s939 = sadd.s32 %s937, %s938
      %s940 = smul.addr %s939, 8
      %s941 = scalar_lea.vmem %s3, %s940
      // Predicated region
      $region33: #{tpu_custom_call.1} parent=31 // pred_check
        %p942 = pneg %p126
      $region34: #{tpu_custom_call.1} parent=31 // pred_check_branch
        %944 = sbr.rel (%p942) target = $region36
      $region35: #{tpu_custom_call.1} parent=31 // pred_region
        %s945 = smul.u32 64, %s19
      $region36: #{tpu_custom_call.1} parent=31 // pred_fallthru
        _
    $region32: #{tpu_custom_call.1} parent=5 // pred_fallthru
      _
    %p946 = scmp.le.s32.totalorder 2, %s9
    // Predicated region
    $region37: #{tpu_custom_call.1} parent=5 // pred_check
      %p947 = pneg %p946
    $region38: #{tpu_custom_call.1} parent=5 // pred_check_branch
      %949 = sbr.rel (%p947) target = $region40
    $region39: #{tpu_custom_call.1} parent=5 // pred_region
      %s950 = ssub.s32 %s9, 2
      // Predicated region
      $region41: #{tpu_custom_call.1} parent=39 // pred_check
        %p951 = pneg %p132
      $region42: #{tpu_custom_call.1} parent=39 // pred_check_branch
        %953 = sbr.rel (%p951) target = $region44
      $region43: #{tpu_custom_call.1} parent=39 // pred_region
        %s954 = smul.u32 64, %s21
        %p955 = scmp.lt.s32.totalorder %s20, 1
        %s956 = scalar_select %p955, %s20, 1
        %p957 = scmp.lt.s32.totalorder %s954, 63
        %s958 = scalar_select %p957, %s954, 63
        %s959 = smul.addr %s956, 64
        %s960 = sadd.s32 %s958, %s959
        %s961 = smul.addr %s960, 8
        %s962 = scalar_lea.vmem %s3, %s961
      $region44: #{tpu_custom_call.1} parent=39 // pred_fallthru
        _
    $region40: #{tpu_custom_call.1} parent=5 // pred_fallthru
      _
  $region6: #{tpu_custom_call.1} parent=0 // loop_footer
    %s13 = sadd.s32 1, %s9
  $region7: #{tpu_custom_call.1} parent=0 // loop_footer_branch
    %8 = sbr.rel target = $region3
  $region8: #{tpu_custom_call.1} parent=0 // loop_exit
    _

</llo_original>
